<compile_context>
chip_gen: v7x
topology: tpu7x:2x2x1
jax: 0.10.0
libtpu: 0.0.40
codegen_flags: <defaults>
</compile_context>

<pallas_src>
import functools

import jax
import jax.numpy as jnp
from jax import lax
from jax.experimental import pallas as pl
from jax.experimental.pallas import tpu as pltpu


def _mlp_edge_kernel(src_ref, dst_ref, g_ref, b1_ref, w2_ref, b2_ref, out_ref):
    # src_ref/dst_ref: (1, TE) int32 edge endpoints for this tile
    # g_ref:           (H, 2N) folded layer-1 table [W1a @ h^T | W1b @ h^T]
    # b1_ref:          (H, 1) f32        w2_ref: (H, 1) f32
    # b2_ref:          (1, 1) f32 in SMEM (scalar read)
    # out_ref:         (1, TE) f32 lane-dense edge scores for this tile
    two_n = g_ref.shape[1]
    n_nodes = two_n // 2
    tile_e = src_ref.shape[1]

    # Stacked one-hot gather: column e has a 1 at row src[e] and row N+dst[e].
    # A single MXU matmul against G yields the layer-1 preactivations.
    ids = lax.broadcasted_iota(jnp.int32, (two_n, tile_e), 0)
    mask = jnp.logical_or(ids == src_ref[...], ids == dst_ref[...] + n_nodes)
    oh = jnp.where(mask, 1.0, 0.0).astype(g_ref.dtype)                 # (2N, TE)

    z1 = jnp.dot(g_ref[...], oh, preferred_element_type=jnp.float32)   # (H, TE)
    a1 = jnp.maximum(z1 + b1_ref[...], 0.0)

    # Layer 2 (output width 1): VPU multiply + sublane reduction, skip the MXU.
    score = jnp.sum(a1 * w2_ref[...], axis=0, keepdims=True) + b2_ref[0, 0]
    out_ref[...] = score.astype(out_ref.dtype)                          # (1, TE)


@functools.partial(jax.jit, static_argnames=("tile_e", "use_bf16"))
def mlp_predictor_forward(h, src, dst, W1, b1, W2, b2, *, tile_e=1024,
                          use_bf16=True):
    """Edge scores for a graph given node features h.

    h:   [N, H] float32 node features
    src: [E]    int32 source node index per edge
    dst: [E]    int32 destination node index per edge
    W1:  [H, 2H] (nn.Linear(2H -> H) weight), b1: [H]
    W2:  [1, H]  (nn.Linear(H -> 1) weight),  b2: [1]
    returns: [E] float32 edge scores
    """
    E = src.shape[0]
    N, H = h.shape

    # --- effective edge-tile width (static Python math) ----------------------
    def _round_up(x, m):
        return ((x + m - 1) // m) * m

    tile_cap = _round_up(max(E, 1), 128)            # never wider than the edges
    if E > 256:                                     # keep >= 2 tiles for v7x TCs
        tile_cap = min(tile_cap, _round_up((E + 1) // 2, 128))
    tile_e = max(128, min(_round_up(tile_e, 128), tile_cap))

    num_tiles = pl.cdiv(E, tile_e)
    e_pad = num_tiles * tile_e
    pad = e_pad - E

    src_p = jnp.pad(src.astype(jnp.int32), (0, pad)).reshape(num_tiles, 1, tile_e)
    dst_p = jnp.pad(dst.astype(jnp.int32), (0, pad)).reshape(num_tiles, 1, tile_e)

    # --- fold W1 into the node table (amortized over all edge tiles) --------
    hT = h.astype(jnp.float32).T                                     # (H, N)
    w1 = W1.astype(jnp.float32)
    G = jnp.concatenate([w1[:, :H] @ hT, w1[:, H:] @ hT], axis=1)    # (H, 2N)
    table_dtype = jnp.bfloat16 if use_bf16 else jnp.float32
    G = G.astype(table_dtype)

    b1c = b1.reshape(H, 1).astype(jnp.float32)
    w2c = W2.reshape(1, H).T.astype(jnp.float32)                     # (H, 1)
    b2c = b2.reshape(1, 1).astype(jnp.float32)

    # --- VMEM budget: raise the scoped limit only when actually needed ------
    itemsize = jnp.dtype(table_dtype).itemsize
    resident = H * 2 * N * itemsize + 2 * H * 4                      # G + b1 + w2
    per_tile = tile_e * (2 * 4 + 2 * N * itemsize + 3 * H * 4 + 4)   # idx/oh/acts/out
    est = 2 * resident + 4 * per_tile + (1 << 20)
    vmem_limit = None
    if est > 24 * (1 << 20):
        vmem_limit = int(min(est, 96 * (1 << 20)))

    # TODO(synk): on v7x, add pipeline_mode=pl.Buffered(1) to the resident
    # G/b1/w2 specs (single-buffer) once N*H grows toward the 64 MiB budget.
    # TODO(synk): for N beyond a few thousand, replace the one-hot MXU gather
    # with scalar-prefetched src/dst driving a manual DMA row gather from a
    # pl.ANY h ref (per-edge cost O(H) instead of O(N + H)).
    out = pl.pallas_call(
        _mlp_edge_kernel,
        out_shape=jax.ShapeDtypeStruct((num_tiles, 1, tile_e), jnp.float32),
        grid_spec=pltpu.PrefetchScalarGridSpec(
            num_scalar_prefetch=0,
            grid=(num_tiles,),
            in_specs=[
                pl.BlockSpec((None, 1, tile_e), lambda i: (i, 0, 0)),   # src tile
                pl.BlockSpec((None, 1, tile_e), lambda i: (i, 0, 0)),   # dst tile
                pl.BlockSpec((H, 2 * N), lambda i: (0, 0)),             # G (resident)
                pl.BlockSpec((H, 1), lambda i: (0, 0)),                 # b1
                pl.BlockSpec((H, 1), lambda i: (0, 0)),                 # W2^T
                pl.BlockSpec(memory_space=pltpu.MemorySpace.SMEM),      # b2 scalar
            ],
            out_specs=pl.BlockSpec((None, 1, tile_e), lambda i: (i, 0, 0)),
        ),
        compiler_params=pltpu.CompilerParams(
            # Edge tiles are independent -> shard across TensorCores on v7x.
            dimension_semantics=("parallel",),
            vmem_limit_bytes=vmem_limit,
        ),
    )(src_p, dst_p, G, b1c, w2c, b2c)

    return out.reshape(e_pad)[:E]


def reference_forward(h, src, dst, W1, b1, W2, b2):
    h_cat = jnp.concatenate([h[src], h[dst]], axis=1)
    z1 = jnp.maximum(h_cat @ W1.T + b1, 0.0)
    return (z1 @ W2.T + b2)[:, 0]


if __name__ == "__main__":
    key = jax.random.PRNGKey(0)
    H = 32          # h_feats
    N = 16          # number of nodes
    E = 1000        # number of edges (deliberately NOT a multiple of the tile)

    k_h, k_src, k_dst, k_w1, k_b1, k_w2, k_b2 = jax.random.split(key, 7)

    h = jax.random.normal(k_h, (N, H), dtype=jnp.float32)
    src = jax.random.randint(k_src, (E,), 0, N, dtype=jnp.int32)
    dst = jax.random.randint(k_dst, (E,), 0, N, dtype=jnp.int32)

    # Deterministic parameter init (shapes per nn.Linear(2H, H) / nn.Linear(H, 1)).
    bound1 = 1.0 / jnp.sqrt(2.0 * H)
    W1 = jax.random.uniform(k_w1, (H, 2 * H), jnp.float32, -bound1, bound1)
    b1 = jax.random.uniform(k_b1, (H,), jnp.float32, -bound1, bound1)
    bound2 = 1.0 / jnp.sqrt(1.0 * H)
    W2 = jax.random.uniform(k_w2, (1, H), jnp.float32, -bound2, bound2)
    b2 = jax.random.uniform(k_b2, (1,), jnp.float32, -bound2, bound2)

    ref = reference_forward(h, src, dst, W1, b1, W2, b2)

    # Fast (default) path: bf16 MXU table, fp32 accumulate -> loose tolerance.
    score = jax.block_until_ready(
        mlp_predictor_forward(h, src, dst, W1, b1, W2, b2))
    assert score.shape == (E,)
    assert jnp.allclose(score, ref, atol=3e-2, rtol=3e-2), float(
        jnp.max(jnp.abs(score - ref)))

    # Exact path: f32 table -> tight tolerance.
    score_f32 = jax.block_until_ready(
        mlp_predictor_forward(h, src, dst, W1, b1, W2, b2, use_bf16=False))
    assert jnp.allclose(score_f32, ref, atol=1e-4, rtol=1e-4), float(
        jnp.max(jnp.abs(score_f32 - ref)))

    print("KERNEL_OK")
</pallas_src>

<mosaic_0001>
module attributes {stable_mosaic.version = 11 : i64} {
  func.func @_mlp_edge_kernel(%arg0: i32, %arg1: memref<1x1x512xi32, #tpu.memory_space<vmem>>, %arg2: memref<1x1x512xi32, #tpu.memory_space<vmem>>, %arg3: memref<32x32xbf16, #tpu.memory_space<vmem>>, %arg4: memref<32x1xf32, #tpu.memory_space<vmem>>, %arg5: memref<32x1xf32, #tpu.memory_space<vmem>>, %arg6: memref<1x1xf32, #tpu.memory_space<smem>>, %arg7: memref<1x1x512xf32, #tpu.memory_space<vmem>>) attributes {dimension_semantics = [#tpu.dimension_semantics<parallel>], iteration_bounds = array<i64: 2>, scalar_prefetch = 0 : i64, scratch_operands = 0 : i64, tpu.core_type = #tpu.core_type<tc>, window_params = [{transform_indices = @transform_0, window_bounds = array<i64: 1, 1, 512>}, {transform_indices = @transform_1, window_bounds = array<i64: 1, 1, 512>}, {pipeline_mode = #tpu.pipeline_mode<synchronous>, transform_indices = @transform_2, window_bounds = array<i64: 32, 32>}, {pipeline_mode = #tpu.pipeline_mode<synchronous>, transform_indices = @transform_3, window_bounds = array<i64: 32, 1>}, {pipeline_mode = #tpu.pipeline_mode<synchronous>, transform_indices = @transform_4, window_bounds = array<i64: 32, 1>}, {transform_indices = @transform_5, window_bounds = array<i64: 1, 1>}, {transform_indices = @transform_6, window_bounds = array<i64: 1, 1, 512>}]} {
    %0 = tpu.iota {dimensions = array<i32: 0>} : vector<32x512xi32>
    %c0 = arith.constant 0 : index
    %c0_0 = arith.constant 0 : index
    %c0_1 = arith.constant 0 : index
    %1 = vector.load %arg1[%c0, %c0_0, %c0_1] : memref<1x1x512xi32, #tpu.memory_space<vmem>>, vector<1x1x512xi32>
    %2 = vector.shape_cast %1 : vector<1x1x512xi32> to vector<1x512xi32>
    %3 = vector.broadcast %2 : vector<1x512xi32> to vector<32x512xi32>
    %4 = arith.cmpi eq, %0, %3 : vector<32x512xi32>
    %c0_2 = arith.constant 0 : index
    %c0_3 = arith.constant 0 : index
    %c0_4 = arith.constant 0 : index
    %5 = vector.load %arg2[%c0_2, %c0_3, %c0_4] : memref<1x1x512xi32, #tpu.memory_space<vmem>>, vector<1x1x512xi32>
    %6 = vector.shape_cast %5 : vector<1x1x512xi32> to vector<1x512xi32>
    %c16_i32 = arith.constant 16 : i32
    %7 = vector.broadcast %c16_i32 : i32 to vector<1x512xi32>
    %8 = arith.addi %6, %7 : vector<1x512xi32>
    %9 = vector.broadcast %8 : vector<1x512xi32> to vector<32x512xi32>
    %10 = arith.cmpi eq, %0, %9 : vector<32x512xi32>
    %11 = arith.ori %4, %10 : vector<32x512xi1>
    %cst = arith.constant 1.000000e+00 : f32
    %cst_5 = arith.constant 0.000000e+00 : f32
    %12 = vector.broadcast %cst : f32 to vector<32x512xf32>
    %13 = vector.broadcast %cst_5 : f32 to vector<32x512xf32>
    %14 = arith.select %11, %12, %13 : vector<32x512xi1>, vector<32x512xf32>
    %15 = arith.truncf %14 : vector<32x512xf32> to vector<32x512xbf16>
    %c0_6 = arith.constant 0 : index
    %c0_7 = arith.constant 0 : index
    %16 = vector.load %arg3[%c0_6, %c0_7] : memref<32x32xbf16, #tpu.memory_space<vmem>>, vector<32x32xbf16>
    %cst_8 = arith.constant dense<0.000000e+00> : vector<32x512xf32>
    %17 = tpu.matmul %16, %15, %cst_8 {dimension_numbers = #tpu.dot_dimension_numbers<[1], [0], [0], [1], [0, 0, 1, 1], [], []>} : vector<32x32xbf16>, vector<32x512xbf16>, vector<32x512xf32> -> vector<32x512xf32>
    %c0_9 = arith.constant 0 : index
    %c0_10 = arith.constant 0 : index
    %18 = vector.load %arg4[%c0_9, %c0_10] : memref<32x1xf32, #tpu.memory_space<vmem>>, vector<32x1xf32>
    %19 = vector.broadcast %18 : vector<32x1xf32> to vector<32x512xf32>
    %20 = arith.addf %17, %19 : vector<32x512xf32>
    %cst_11 = arith.constant 0.000000e+00 : f32
    %21 = vector.broadcast %cst_11 : f32 to vector<32x512xf32>
    %22 = arith.maximumf %20, %21 : vector<32x512xf32>
    %c0_12 = arith.constant 0 : index
    %c0_13 = arith.constant 0 : index
    %23 = vector.load %arg5[%c0_12, %c0_13] : memref<32x1xf32, #tpu.memory_space<vmem>>, vector<32x1xf32>
    %24 = vector.broadcast %23 : vector<32x1xf32> to vector<32x512xf32>
    %25 = arith.mulf %22, %24 : vector<32x512xf32>
    %cst_14 = arith.constant dense<0.000000e+00> : vector<512xf32>
    %26 = vector.multi_reduction <add>, %25, %cst_14 [0] : vector<32x512xf32> to vector<512xf32>
    %27 = vector.shape_cast %26 : vector<512xf32> to vector<1x512xf32>
    %c0_15 = arith.constant 0 : index
    %c0_16 = arith.constant 0 : index
    %28 = memref.load %arg6[%c0_15, %c0_16] : memref<1x1xf32, #tpu.memory_space<smem>>
    %29 = vector.broadcast %28 : f32 to vector<1x512xf32>
    %30 = arith.addf %27, %29 : vector<1x512xf32>
    %c0_17 = arith.constant 0 : index
    %c0_18 = arith.constant 0 : index
    %c0_19 = arith.constant 0 : index
    %31 = vector.load %arg7[%c0_17, %c0_18, %c0_19] : memref<1x1x512xf32, #tpu.memory_space<vmem>>, vector<1x1x512xf32>
    %32 = vector.shape_cast %31 : vector<1x1x512xf32> to vector<1x512xf32>
    %33 = vector.shape_cast %30 : vector<1x512xf32> to vector<1x1x512xf32>
    tpu.vector_store %arg7[%c0_17, %c0_18, %c0_19], %33 {strides = array<i32>} : memref<1x1x512xf32, #tpu.memory_space<vmem>>, vector<1x1x512xf32>,
    return
  }
  func.func @transform_0(%arg0: i32) -> (i32, i32, i32) {
    %c0_i32 = arith.constant 0 : i32
    %c0_i32_0 = arith.constant 0 : i32
    %c0_i32_1 = arith.constant 0 : i32
    return %arg0, %c0_i32, %c0_i32_0 : i32, i32, i32
  }
  func.func @transform_1(%arg0: i32) -> (i32, i32, i32) {
    %c0_i32 = arith.constant 0 : i32
    %c0_i32_0 = arith.constant 0 : i32
    %c0_i32_1 = arith.constant 0 : i32
    return %arg0, %c0_i32, %c0_i32_0 : i32, i32, i32
  }
  func.func @transform_2(%arg0: i32) -> (i32, i32) {
    %c0_i32 = arith.constant 0 : i32
    %c0_i32_0 = arith.constant 0 : i32
    %c0_i32_1 = arith.constant 0 : i32
    return %c0_i32, %c0_i32_0 : i32, i32
  }
  func.func @transform_3(%arg0: i32) -> (i32, i32) {
    %c0_i32 = arith.constant 0 : i32
    %c0_i32_0 = arith.constant 0 : i32
    %c0_i32_1 = arith.constant 0 : i32
    return %c0_i32, %c0_i32_0 : i32, i32
  }
  func.func @transform_4(%arg0: i32) -> (i32, i32) {
    %c0_i32 = arith.constant 0 : i32
    %c0_i32_0 = arith.constant 0 : i32
    %c0_i32_1 = arith.constant 0 : i32
    return %c0_i32, %c0_i32_0 : i32, i32
  }
  func.func @transform_5(%arg0: i32) -> (i32, i32) {
    %c0_i32 = arith.constant 0 : i32
    %c0_i32_0 = arith.constant 0 : i32
    %c0_i32_1 = arith.constant 0 : i32
    return %c0_i32, %c0_i32_0 : i32, i32
  }
  func.func @transform_6(%arg0: i32) -> (i32, i32, i32) {
    %c0_i32 = arith.constant 0 : i32
    %c0_i32_0 = arith.constant 0 : i32
    %c0_i32_1 = arith.constant 0 : i32
    return %arg0, %c0_i32, %c0_i32_0 : i32, i32, i32
  }
}

</mosaic_0001>

<llo_original>
// kernel: mlp_predictor_forward.1
$region0: #{mlp_predictor_forward.1}
  #allocation0 [shape = 'u32[]', space=smem, size = 0x4, offset = 0x4, fixed_abs, tag = 'smem constant byte address 0x4 - core index']
  #allocation1 [shape = 'u32[144,128]{1,0:T(1,128)}', space=vmem, size = 0x12000, scoped, tag = 'internal scratch']
  #allocation2 [shape = 'f32[1,1]{1,0:T(1,128)S(6)}', space=smem, size = 0x200, scoped, tag = 'scoped memory for mlp_predictor_forward.1']
  %s0 = inlined_call_operand.vmem [shape: s32[2,1,512], index: 0, kind: input, shape index: {}]
  %s1 = inlined_call_operand.vmem [shape: s32[2,1,512], index: 1, kind: input, shape index: {}]
  %s2 = inlined_call_operand.vmem [shape: bf16[32,32], index: 2, kind: input, shape index: {}]
  %s3 = inlined_call_operand.vmem [shape: f32[32,1], index: 3, kind: input, shape index: {}]
  %s4 = inlined_call_operand.vmem [shape: f32[32,1], index: 4, kind: input, shape index: {}]
  %s5 = inlined_call_operand.<no memory space> [shape: f32[1,1], index: 5, kind: input, shape index: {}]
  %s6 = inlined_call_operand.hbm [shape: f32[2,1,512], index: 6, kind: output, shape index: {}]
  %s7 = sld [smem:[#allocation0]]
  $region57: #{mlp_predictor_forward.1} parent=0
    _
  %s9 = ssub.s32 1, %s7
  %s10 = scalar_select 0, %s9, %s7
  %11 = sst [smem:[#allocation2]] %s5
  $region1: #{mlp_predictor_forward.1} parent=0
    #allocation3 [shape = 'u8[4096]{0}', space=vmem, size = 0x1000, scoped, tag = 'output window, operand 0']
    #allocation4 [shape = 's32[2]{0}', space=sflag, size = 0x8, scoped, tag = 'scoped memory for mlp_predictor_forward.1']
    %12 = vsyncpa [#allocation4], 0
    %s13 = scalar_lea.sflag [#allocation4], 1
    %14 = vsyncpa %s13, 0
    loop: start=0, step=1, limit=4
    $region2: #{mlp_predictor_forward.1} parent=1 // loop_pre_header
      _
    $region3: #{mlp_predictor_forward.1} parent=1 // loop_header
      %s16 = sphi 0, %s20
      %p17 = scmp.ge.s32.totalorder %s16, 4
      %s26 = sphi 0, %s28
      %s29 = sphi 0, %s26
      %s30 = sphi 0, %s29
      %s46 = sphi 0, %s30
      %s52 = sphi 0, %s54
      %s55 = sphi 0, %s52
      %s56 = sphi 0, %s55
      %s72 = sphi 0, %s56
      %s76 = sphi 0, %s76
      %s78 = sphi 0, %s76
      %s79 = sphi 0, %s78
      %s93 = sphi 0, %s79
      %s97 = sphi 0, %s97
      %s99 = sphi 0, %s97
      %s100 = sphi 0, %s99
      %s114 = sphi 0, %s100
      %s118 = sphi 0, %s118
      %s120 = sphi 0, %s118
      %s121 = sphi 0, %s120
      %s135 = sphi 0, %s121
      %s139 = sphi 0, %s139
      %s141 = sphi 0, %s139
      %s142 = sphi 0, %s141
      %s156 = sphi 0, %s142
      %s162 = sphi 0, %s164
      %s165 = sphi 0, %s162
      %s166 = sphi 0, %s165
      %s182 = sphi 0, %s166
    $region4: #{mlp_predictor_forward.1} parent=1 // loop_header_branch
      %19 = sbr.rel (%p17) target = $region8
    $region5: #{mlp_predictor_forward.1} parent=1 // loop_body
      %s21 = ssub.s32 %s16, 1
      %s22 = ssub.s32 %s16, 2
      %s23 = sadd.s32 %s16, 1
      %s24 = ssub.s32 %s16, %s23
      %p25 = scmp.eq.s32.totalorder %s24, 0
      %s27 = sadd.s32 %s26, 1
      %s28 = scalar_select %p25, %s26, %s27
      %p31 = pneg %p25
      %p32 = scmp.eq.s32.totalorder %s16, 1
      %p33 = por %p31, %p32
      %p34 = scmp.ne.s32.totalorder %s26, %s29
      %p35 = scmp.eq.s32.totalorder %s16, 0
      %p36 = por %p34, %p35
      %p37 = scmp.ne.s32.totalorder %s26, %s29
      %p38 = scmp.eq.s32.totalorder %s21, 1
      %p39 = por %p37, %p38
      %p40 = scmp.ne.s32.totalorder %s29, %s30
      %p41 = scmp.eq.s32.totalorder %s21, 0
      %p42 = por %p40, %p41
      %p43 = scmp.ne.s32.totalorder %s29, %s30
      %p44 = scmp.eq.s32.totalorder %s22, 1
      %p45 = por %p43, %p44
      %p47 = scmp.ne.s32.totalorder %s30, %s46
      %p48 = scmp.eq.s32.totalorder %s22, 0
      %p49 = por %p47, %p48
      %s50 = ssub.s32 %s16, %s23
      %p51 = scmp.eq.s32.totalorder %s50, 0
      %s53 = sadd.s32 %s52, 1
      %s54 = scalar_select %p51, %s52, %s53
      %p57 = pneg %p51
      %p58 = scmp.eq.s32.totalorder %s16, 1
      %p59 = por %p57, %p58
      %p60 = scmp.ne.s32.totalorder %s52, %s55
      %p61 = scmp.eq.s32.totalorder %s16, 0
      %p62 = por %p60, %p61
      %p63 = scmp.ne.s32.totalorder %s52, %s55
      %p64 = scmp.eq.s32.totalorder %s21, 1
      %p65 = por %p63, %p64
      %p66 = scmp.ne.s32.totalorder %s55, %s56
      %p67 = scmp.eq.s32.totalorder %s21, 0
      %p68 = por %p66, %p67
      %p69 = scmp.ne.s32.totalorder %s55, %s56
      %p70 = scmp.eq.s32.totalorder %s22, 1
      %p71 = por %p69, %p70
      %p73 = scmp.ne.s32.totalorder %s56, %s72
      %p74 = scmp.eq.s32.totalorder %s22, 0
      %p75 = por %p73, %p74
      %s77 = sadd.s32 %s76, 1
      %p80 = scmp.eq.s32.totalorder %s16, 1
      %p81 = scmp.ne.s32.totalorder %s76, %s78
      %p82 = scmp.eq.s32.totalorder %s16, 0
      %p83 = por %p81, %p82
      %p84 = scmp.ne.s32.totalorder %s76, %s78
      %p85 = scmp.eq.s32.totalorder %s21, 1
      %p86 = por %p84, %p85
      %p87 = scmp.ne.s32.totalorder %s78, %s79
      %p88 = scmp.eq.s32.totalorder %s21, 0
      %p89 = por %p87, %p88
      %p90 = scmp.ne.s32.totalorder %s78, %s79
      %p91 = scmp.eq.s32.totalorder %s22, 1
      %p92 = por %p90, %p91
      %p94 = scmp.ne.s32.totalorder %s79, %s93
      %p95 = scmp.eq.s32.totalorder %s22, 0
      %p96 = por %p94, %p95
      %s98 = sadd.s32 %s97, 1
      %p101 = scmp.eq.s32.totalorder %s16, 1
      %p102 = scmp.ne.s32.totalorder %s97, %s99
      %p103 = scmp.eq.s32.totalorder %s16, 0
      %p104 = por %p102, %p103
      %p105 = scmp.ne.s32.totalorder %s97, %s99
      %p106 = scmp.eq.s32.totalorder %s21, 1
      %p107 = por %p105, %p106
      %p108 = scmp.ne.s32.totalorder %s99, %s100
      %p109 = scmp.eq.s32.totalorder %s21, 0
      %p110 = por %p108, %p109
      %p111 = scmp.ne.s32.totalorder %s99, %s100
      %p112 = scmp.eq.s32.totalorder %s22, 1
      %p113 = por %p111, %p112
      %p115 = scmp.ne.s32.totalorder %s100, %s114
      %p116 = scmp.eq.s32.totalorder %s22, 0
      %p117 = por %p115, %p116
      %s119 = sadd.s32 %s118, 1
      %p122 = scmp.eq.s32.totalorder %s16, 1
      %p123 = scmp.ne.s32.totalorder %s118, %s120
      %p124 = scmp.eq.s32.totalorder %s16, 0
      %p125 = por %p123, %p124
      %p126 = scmp.ne.s32.totalorder %s118, %s120
      %p127 = scmp.eq.s32.totalorder %s21, 1
      %p128 = por %p126, %p127
      %p129 = scmp.ne.s32.totalorder %s120, %s121
      %p130 = scmp.eq.s32.totalorder %s21, 0
      %p131 = por %p129, %p130
      %p132 = scmp.ne.s32.totalorder %s120, %s121
      %p133 = scmp.eq.s32.totalorder %s22, 1
      %p134 = por %p132, %p133
      %p136 = scmp.ne.s32.totalorder %s121, %s135
      %p137 = scmp.eq.s32.totalorder %s22, 0
      %p138 = por %p136, %p137
      %s140 = sadd.s32 %s139, 1
      %p143 = scmp.eq.s32.totalorder %s16, 1
      %p144 = scmp.ne.s32.totalorder %s139, %s141
      %p145 = scmp.eq.s32.totalorder %s16, 0
      %p146 = por %p144, %p145
      %p147 = scmp.ne.s32.totalorder %s139, %s141
      %p148 = scmp.eq.s32.totalorder %s21, 1
      %p149 = por %p147, %p148
      %p150 = scmp.ne.s32.totalorder %s141, %s142
      %p151 = scmp.eq.s32.totalorder %s21, 0
      %p152 = por %p150, %p151
      %p153 = scmp.ne.s32.totalorder %s141, %s142
      %p154 = scmp.eq.s32.totalorder %s22, 1
      %p155 = por %p153, %p154
      %p157 = scmp.ne.s32.totalorder %s142, %s156
      %p158 = scmp.eq.s32.totalorder %s22, 0
      %p159 = por %p157, %p158
      %s160 = ssub.s32 %s16, %s23
      %p161 = scmp.eq.s32.totalorder %s160, 0
      %s163 = sadd.s32 %s162, 1
      %s164 = scalar_select %p161, %s162, %s163
      %p167 = pneg %p161
      %p168 = scmp.eq.s32.totalorder %s16, 1
      %p169 = por %p167, %p168
      %p170 = scmp.ne.s32.totalorder %s162, %s165
      %p171 = scmp.eq.s32.totalorder %s16, 0
      %p172 = por %p170, %p171
      %p173 = scmp.ne.s32.totalorder %s162, %s165
      %p174 = scmp.eq.s32.totalorder %s21, 1
      %p175 = por %p173, %p174
      %p176 = scmp.ne.s32.totalorder %s165, %s166
      %p177 = scmp.eq.s32.totalorder %s21, 0
      %p178 = por %p176, %p177
      %p179 = scmp.ne.s32.totalorder %s165, %s166
      %p180 = scmp.eq.s32.totalorder %s22, 1
      %p181 = por %p179, %p180
      %p183 = scmp.ne.s32.totalorder %s166, %s182
      %p184 = scmp.eq.s32.totalorder %s22, 0
      %p185 = por %p183, %p184
      %p186 = scmp.le.s32.totalorder 1, %s16
      %p187 = scmp.lt.s32.totalorder %s16, 3
      %p188 = pnand %p186, %p187
      %p189 = pneg %p188
      // Predicated region
      $region9: #{mlp_predictor_forward.1} parent=5 // pred_check
        _
      $region10: #{mlp_predictor_forward.1} parent=5 // pred_check_branch
        %191 = sbr.rel (%p188) target = $region12
      $region11: #{mlp_predictor_forward.1} parent=5 // pred_region
        %s192 = ssub.s32 %s16, 1
        // Predicated region
        $region13: #{mlp_predictor_forward.1} parent=11 // pred_check
          %p193 = pneg %p89
        $region14: #{mlp_predictor_forward.1} parent=11 // pred_check_branch
          %195 = sbr.rel (%p193) target = $region16
        $region15: #{mlp_predictor_forward.1} parent=11 // pred_region
          _
        $region16: #{mlp_predictor_forward.1} parent=11 // pred_fallthru
          _
        // Predicated region
        $region17: #{mlp_predictor_forward.1} parent=11 // pred_check
          %p196 = pneg %p110
        $region18: #{mlp_predictor_forward.1} parent=11 // pred_check_branch
          %198 = sbr.rel (%p196) target = $region20
        $region19: #{mlp_predictor_forward.1} parent=11 // pred_region
          _
        $region20: #{mlp_predictor_forward.1} parent=11 // pred_fallthru
          _
        // Predicated region
        $region21: #{mlp_predictor_forward.1} parent=11 // pred_check
          %p199 = pneg %p131
        $region22: #{mlp_predictor_forward.1} parent=11 // pred_check_branch
          %201 = sbr.rel (%p199) target = $region24
        $region23: #{mlp_predictor_forward.1} parent=11 // pred_region
          _
        $region24: #{mlp_predictor_forward.1} parent=11 // pred_fallthru
          _
        // Predicated region
        $region25: #{mlp_predictor_forward.1} parent=11 // pred_check
          %p202 = pneg %p152
        $region26: #{mlp_predictor_forward.1} parent=11 // pred_check_branch
          %204 = sbr.rel (%p202) target = $region28
        $region27: #{mlp_predictor_forward.1} parent=11 // pred_region
          _
        $region28: #{mlp_predictor_forward.1} parent=11 // pred_fallthru
          _
      $region12: #{mlp_predictor_forward.1} parent=5 // pred_fallthru
        _
      %p205 = scmp.lt.s32.totalorder %s16, 2
      // Predicated region
      $region29: #{mlp_predictor_forward.1} parent=5 // pred_check
        %p206 = pneg %p205
      $region30: #{mlp_predictor_forward.1} parent=5 // pred_check_branch
        %208 = sbr.rel (%p206) target = $region32
      $region31: #{mlp_predictor_forward.1} parent=5 // pred_region
        // Predicated region
        $region33: #{mlp_predictor_forward.1} parent=31 // pred_check
          %p209 = pneg %p36
        $region34: #{mlp_predictor_forward.1} parent=31 // pred_check_branch
          %211 = sbr.rel (%p209) target = $region36
        $region35: #{mlp_predictor_forward.1} parent=31 // pred_region
          %p212 = scmp.lt.s32.totalorder %s16, 1
          %s213 = scalar_select %p212, %s16, 1
          %s214 = smul.addr %s213, 4
          %s215 = scalar_lea.vmem %s0, %s214
        $region36: #{mlp_predictor_forward.1} parent=31 // pred_fallthru
          _
        // Predicated region
        $region37: #{mlp_predictor_forward.1} parent=31 // pred_check
          %p216 = pneg %p62
        $region38: #{mlp_predictor_forward.1} parent=31 // pred_check_branch
          %218 = sbr.rel (%p216) target = $region40
        $region39: #{mlp_predictor_forward.1} parent=31 // pred_region
          %p219 = scmp.lt.s32.totalorder %s16, 1
          %s220 = scalar_select %p219, %s16, 1
          %s221 = smul.addr %s220, 4
          %s222 = scalar_lea.vmem %s1, %s221
        $region40: #{mlp_predictor_forward.1} parent=31 // pred_fallthru
          _
      $region32: #{mlp_predictor_forward.1} parent=5 // pred_fallthru
        _
      %p223 = scmp.le.s32.totalorder 1, %s16
      %p224 = scmp.lt.s32.totalorder %s16, 3
      %p225 = pnand %p223, %p224
      %p226 = pneg %p225
      // Predicated region
      $region41: #{mlp_predictor_forward.1} parent=5 // pred_check
        _
      $region42: #{mlp_predictor_forward.1} parent=5 // pred_check_branch
        %228 = sbr.rel (%p225) target = $region44
      $region43: #{mlp_predictor_forward.1} parent=5 // pred_region
        %s229 = ssub.s32 %s16, 1
        %p230 = scmp.lt.s32.totalorder %s21, 1
        %s231 = scalar_select %p230, %s21, 1
        %s232 = smul.addr %s231, 4
        %s233 = scalar_lea.vmem %s0, %s232
        %p234 = pneg %p42
        %p235 = pneg %p39
        %p236 = scmp.lt.s32.totalorder %s21, 1
        %s237 = scalar_select %p236, %s21, 1
        %s238 = smul.addr %s237, 4
        %s239 = scalar_lea.vmem %s1, %s238
        %p240 = pneg %p68
        %p241 = pneg %p65
        %p242 = pneg %p89
        %p243 = pneg %p86
        %p244 = pneg %p110
        %p245 = pneg %p107
        %p246 = pneg %p131
        %p247 = pneg %p128
        %p248 = pneg %p152
        %p249 = pneg %p149
        %p250 = pneg %p178
        %p251 = pneg %p175
        %s252 = sand.u32 %s165, 1
        %s253 = scalar_lea.sflag [#allocation4], %s252
        %s254 = sand.u32 %s165, 1
        %s255 = smul.addr %s254, 4
        %s256 = scalar_lea.vmem [#allocation3], %s255
        %p257 = scmp.lt.s32.totalorder %s21, 1
        %s258 = scalar_select %p257, %s21, 1
        %s259 = smul.addr %s258, 4
        %s260 = scalar_lea.vmem %s0, %s259
        %p261 = scmp.lt.s32.totalorder %s21, 1
        %s262 = scalar_select %p261, %s21, 1
        %s263 = smul.addr %s262, 4
        %s264 = scalar_lea.vmem %s1, %s263
        %v266 = vlaneseq
        %v267 = vshrl.u32 %v266, 7
        %v268 = vadd.s32 %v267, 8
        %v269 = vadd.s32 %v267, 16
        %v270 = vadd.s32 %v267, 24
        %v271 = vld [vmem:[%s260] sm:$0xf]
        %v272 = vlaneseq
        %v273 = vshrl.u32 %v272, 7
        %v274 = vsub.s32 0, %v273
        %v275 = vrot.slane %v271, %v274
        %v276 = vlaneseq
        %v277 = vshrl.u32 %v276, 7
        %v278 = vsub.s32 1, %v277
        %v279 = vrot.slane %v271, %v278
        %v280 = vlaneseq
        %v281 = vshrl.u32 %v280, 7
        %v282 = vsub.s32 2, %v281
        %v283 = vrot.slane %v271, %v282
        %v284 = vlaneseq
        %v285 = vshrl.u32 %v284, 7
        %v286 = vsub.s32 3, %v285
        %v287 = vrot.slane %v271, %v286
        %vm288 = vcmp.eq.s32.totalorder %v267, %v275
        %vm289 = vcmp.eq.s32.totalorder %v267, %v279
        %vm290 = vcmp.eq.s32.totalorder %v267, %v283
        %vm291 = vcmp.eq.s32.totalorder %v267, %v287
        %vm292 = vcmp.eq.s32.totalorder %v268, %v275
        %vm293 = vcmp.eq.s32.totalorder %v268, %v279
        %vm294 = vcmp.eq.s32.totalorder %v268, %v283
        %vm295 = vcmp.eq.s32.totalorder %v268, %v287
        %vm296 = vcmp.eq.s32.totalorder %v269, %v275
        %vm297 = vcmp.eq.s32.totalorder %v269, %v279
        %vm298 = vcmp.eq.s32.totalorder %v269, %v283
        %vm299 = vcmp.eq.s32.totalorder %v269, %v287
        %vm300 = vcmp.eq.s32.totalorder %v270, %v275
        %vm301 = vcmp.eq.s32.totalorder %v270, %v279
        %vm302 = vcmp.eq.s32.totalorder %v270, %v283
        %vm303 = vcmp.eq.s32.totalorder %v270, %v287
        %v304 = vld [vmem:[%s264] sm:$0xf]
        %v305 = vadd.s32 %v304, 16
        %v306 = vlaneseq
        %v307 = vshrl.u32 %v306, 7
        %v308 = vsub.s32 0, %v307
        %v309 = vrot.slane %v305, %v308
        %v310 = vlaneseq
        %v311 = vshrl.u32 %v310, 7
        %v312 = vsub.s32 1, %v311
        %v313 = vrot.slane %v305, %v312
        %v314 = vlaneseq
        %v315 = vshrl.u32 %v314, 7
        %v316 = vsub.s32 2, %v315
        %v317 = vrot.slane %v305, %v316
        %v318 = vlaneseq
        %v319 = vshrl.u32 %v318, 7
        %v320 = vsub.s32 3, %v319
        %v321 = vrot.slane %v305, %v320
        %vm322 = vcmp.eq.s32.totalorder %v267, %v309
        %vm323 = vcmp.eq.s32.totalorder %v267, %v313
        %vm324 = vcmp.eq.s32.totalorder %v267, %v317
        %vm325 = vcmp.eq.s32.totalorder %v267, %v321
        %vm326 = vcmp.eq.s32.totalorder %v268, %v309
        %vm327 = vcmp.eq.s32.totalorder %v268, %v313
        %vm328 = vcmp.eq.s32.totalorder %v268, %v317
        %vm329 = vcmp.eq.s32.totalorder %v268, %v321
        %vm330 = vcmp.eq.s32.totalorder %v269, %v309
        %vm331 = vcmp.eq.s32.totalorder %v269, %v313
        %vm332 = vcmp.eq.s32.totalorder %v269, %v317
        %vm333 = vcmp.eq.s32.totalorder %v269, %v321
        %vm334 = vcmp.eq.s32.totalorder %v270, %v309
        %vm335 = vcmp.eq.s32.totalorder %v270, %v313
        %vm336 = vcmp.eq.s32.totalorder %v270, %v317
        %vm337 = vcmp.eq.s32.totalorder %v270, %v321
        %vm338 = vmor %vm288, %vm322
        %vm339 = vmor %vm289, %vm323
        %vm340 = vmor %vm290, %vm324
        %vm341 = vmor %vm291, %vm325
        %vm342 = vmor %vm292, %vm326
        %vm343 = vmor %vm293, %vm327
        %vm344 = vmor %vm294, %vm328
        %vm345 = vmor %vm295, %vm329
        %vm346 = vmor %vm296, %vm330
        %vm347 = vmor %vm297, %vm331
        %vm348 = vmor %vm298, %vm332
        %vm349 = vmor %vm299, %vm333
        %vm350 = vmor %vm300, %vm334
        %vm351 = vmor %vm301, %vm335
        %vm352 = vmor %vm302, %vm336
        %vm353 = vmor %vm303, %vm337
        %v354 = vsel %vm338, 1.0, 0.0
        %v355 = vsel %vm339, 1.0, 0.0
        %v356 = vsel %vm340, 1.0, 0.0
        %v357 = vsel %vm341, 1.0, 0.0
        %v358 = vsel %vm342, 1.0, 0.0
        %v359 = vsel %vm343, 1.0, 0.0
        %v360 = vsel %vm344, 1.0, 0.0
        %v361 = vsel %vm345, 1.0, 0.0
        %v362 = vsel %vm346, 1.0, 0.0
        %v363 = vsel %vm347, 1.0, 0.0
        %v364 = vsel %vm348, 1.0, 0.0
        %v365 = vsel %vm349, 1.0, 0.0
        %v366 = vsel %vm350, 1.0, 0.0
        %v367 = vsel %vm351, 1.0, 0.0
        %v368 = vsel %vm352, 1.0, 0.0
        %v369 = vsel %vm353, 1.0, 0.0
        %v370 = vpack.c.bf16 %v358, %v354
        %v371 = vpack.c.bf16 %v359, %v355
        %v372 = vpack.c.bf16 %v360, %v356
        %v373 = vpack.c.bf16 %v361, %v357
        %v374 = vpack.c.bf16 %v366, %v362
        %v375 = vpack.c.bf16 %v367, %v363
        %v376 = vpack.c.bf16 %v368, %v364
        %v377 = vpack.c.bf16 %v369, %v365
        %v378 = vld [vmem:[%s2] sm:$0xf]
        %v379 = vld [vmem:[%s2 + $0x4] sm:$0xf]
        %v380 = vld [vmem:[%s2 + $0x8] sm:$0xf]
        %v381 = vld [vmem:[%s2 + $0xc] sm:$0xf]
        %v382 = vld [vmem:[%s3] sm:$0xff]
        %v383 = vld [vmem:[%s3 + $0x8] sm:$0xff]
        %v384 = vld [vmem:[%s3 + $0x10] sm:$0xff]
        %v385 = vld [vmem:[%s3 + $0x18] sm:$0xff]
        %387 = vset.pattern.permute.xlu0 0
        %388 = vperm.xlu0 %387, %v382
        %v389 = vpop.permute.xlu0 %388
        %392 = vset.pattern.permute.xlu0 0
        %393 = vperm.xlu0 %392, %v383
        %v394 = vpop.permute.xlu0 %393
        %397 = vset.pattern.permute.xlu0 0
        %398 = vperm.xlu0 %397, %v384
        %v399 = vpop.permute.xlu0 %398
        %402 = vset.pattern.permute.xlu0 0
        %403 = vperm.xlu0 %402, %v385
        %v404 = vpop.permute.xlu0 %403
        %v410 = vunpack.c.l.b16 %v378
        %v411 = vunpack.c.l.b16 %v379
        %v412 = vunpack.c.l.b16 %v380
        %v413 = vunpack.c.l.b16 %v381
        %v414 = vpack.c.b16 %v411, %v410
        %v415 = vpack.c.b16 %v413, %v412
        %vm416 = vcmask 261120
        %v418 = vsel %vm416, %v414, 0
        %v421 = vsel %vm416, %v415, 0
        %423 = vmatprep.subr.bf16.mxu0 %v371
        %424 = vmatpush1.bf16.msra.mxu0 %v370
        %425 = vmatprep.subr.bf16.mxu0 %v375
        %426 = vmatpush1.bf16.msra.mxu0 %v374
        %427 = vmatprep.subr.bf16.mxu0 0
        %428 = vmatpush1.bf16.msra.mxu0 0
        %429 = vmatprep.subr.bf16.mxu0 0
        %430 = vmatpush1.bf16.msra.mxu0 0
        %431 = vmatprep.subr.bf16.mxu0 0
        %432 = vmatpush1.bf16.msra.mxu0 0
        %433 = vmatprep.subr.bf16.mxu0 0
        %434 = vmatpush1.bf16.msra.mxu0 0
        %435 = vmatprep.subr.bf16.mxu0 0
        %436 = vmatpush1.bf16.msra.mxu0 0
        %437 = vmatprep.subr.bf16.mxu0 0
        %438 = vmatpush1.bf16.msra.mxu0 0
        %439 = vmatprep.subr.bf16.mxu0 0
        %440 = vmatpush1.bf16.msra.mxu0 0
        %441 = vmatprep.subr.bf16.mxu0 0
        %442 = vmatpush1.bf16.msra.mxu0 0
        %443 = vmatprep.subr.bf16.mxu0 0
        %444 = vmatpush1.bf16.msra.mxu0 0
        %445 = vmatprep.subr.bf16.mxu0 0
        %446 = vmatpush1.bf16.msra.mxu0 0
        %447 = vmatprep.subr.bf16.mxu0 0
        %448 = vmatpush1.bf16.msra.mxu0 0
        %449 = vmatprep.subr.bf16.mxu0 0
        %450 = vmatpush1.bf16.msra.mxu0 0
        %451 = vmatprep.subr.bf16.mxu0 0
        %452 = vmatpush1.bf16.msra.mxu0 0
        %453 = vmatprep.subr.bf16.mxu0 0
        %454 = vmatpush1.bf16.msra.mxu0 0
        %455 = vmatprep.mubr.bf16.mxu0 0
        %456 = vmatmul.mubr.bf16.gmra.mrb[0].mxu0 %v418
        %v457 = vpop.f32.mrb[0].mxu0
        %v458 = vadd.f32 %v389, %v457
        %v459 = vpop.f32.mrb[0].mxu0
        %v460 = vadd.f32 %v389, %v459
        %v461 = vpop.f32.mrb[0].mxu0
        %v462 = vadd.f32 %v394, %v461
        %v463 = vpop.f32.mrb[0].mxu0
        %v464 = vadd.f32 %v394, %v463
        %465 = vmatprep.mubr.bf16.mxu0 0
        %466 = vmatmul.mubr.bf16.gmra.mrb[0].mxu0 %v421
        %v467 = vpop.f32.mrb[0].mxu0
        %v468 = vadd.f32 %v399, %v467
        %v469 = vpop.f32.mrb[0].mxu0
        %v470 = vadd.f32 %v399, %v469
        %v471 = vpop.f32.mrb[0].mxu0
        %v472 = vadd.f32 %v404, %v471
        %v473 = vpop.f32.mrb[0].mxu0
        %v474 = vadd.f32 %v404, %v473
        %475 = vdwg.mxu0
        %476 = vmatprep.subr.bf16.mxu0 %v373
        %477 = vmatpush1.bf16.msra.mxu0 %v372
        %478 = vmatprep.subr.bf16.mxu0 %v377
        %479 = vmatpush1.bf16.msra.mxu0 %v376
        %480 = vmatprep.subr.bf16.mxu0 0
        %481 = vmatpush1.bf16.msra.mxu0 0
        %482 = vmatprep.subr.bf16.mxu0 0
        %483 = vmatpush1.bf16.msra.mxu0 0
        %484 = vmatprep.subr.bf16.mxu0 0
        %485 = vmatpush1.bf16.msra.mxu0 0
        %486 = vmatprep.subr.bf16.mxu0 0
        %487 = vmatpush1.bf16.msra.mxu0 0
        %488 = vmatprep.subr.bf16.mxu0 0
        %489 = vmatpush1.bf16.msra.mxu0 0
        %490 = vmatprep.subr.bf16.mxu0 0
        %491 = vmatpush1.bf16.msra.mxu0 0
        %492 = vmatprep.subr.bf16.mxu0 0
        %493 = vmatpush1.bf16.msra.mxu0 0
        %494 = vmatprep.subr.bf16.mxu0 0
        %495 = vmatpush1.bf16.msra.mxu0 0
        %496 = vmatprep.subr.bf16.mxu0 0
        %497 = vmatpush1.bf16.msra.mxu0 0
        %498 = vmatprep.subr.bf16.mxu0 0
        %499 = vmatpush1.bf16.msra.mxu0 0
        %500 = vmatprep.subr.bf16.mxu0 0
        %501 = vmatpush1.bf16.msra.mxu0 0
        %502 = vmatprep.subr.bf16.mxu0 0
        %503 = vmatpush1.bf16.msra.mxu0 0
        %504 = vmatprep.subr.bf16.mxu0 0
        %505 = vmatpush1.bf16.msra.mxu0 0
        %506 = vmatprep.subr.bf16.mxu0 0
        %507 = vmatpush1.bf16.msra.mxu0 0
        %508 = vmatprep.mubr.bf16.mxu0 0
        %509 = vmatmul.mubr.bf16.gmra.mrb[0].mxu0 %v418
        %v510 = vpop.f32.mrb[0].mxu0
        %v511 = vadd.f32 %v389, %v510
        %v512 = vpop.f32.mrb[0].mxu0
        %v513 = vadd.f32 %v389, %v512
        %v514 = vpop.f32.mrb[0].mxu0
        %v515 = vadd.f32 %v394, %v514
        %v516 = vpop.f32.mrb[0].mxu0
        %v517 = vadd.f32 %v394, %v516
        %518 = vmatprep.mubr.bf16.mxu0 0
        %519 = vmatmul.mubr.bf16.gmra.mrb[0].mxu0 %v421
        %v520 = vpop.f32.mrb[0].mxu0
        %v521 = vadd.f32 %v399, %v520
        %v522 = vpop.f32.mrb[0].mxu0
        %v523 = vadd.f32 %v399, %v522
        %v524 = vpop.f32.mrb[0].mxu0
        %v525 = vadd.f32 %v404, %v524
        %v526 = vpop.f32.mrb[0].mxu0
        %v527 = vadd.f32 %v404, %v526
        %528 = vdwg.mxu0
        %v529 = vmax.f32 %v458, 0.0
        %v530 = vmax.f32 %v460, 0.0
        %v531 = vmax.f32 %v511, 0.0
        %v532 = vmax.f32 %v513, 0.0
        %v533 = vmax.f32 %v462, 0.0
        %v534 = vmax.f32 %v464, 0.0
        %v535 = vmax.f32 %v515, 0.0
        %v536 = vmax.f32 %v517, 0.0
        %v537 = vmax.f32 %v468, 0.0
        %v538 = vmax.f32 %v470, 0.0
        %v539 = vmax.f32 %v521, 0.0
        %v540 = vmax.f32 %v523, 0.0
        %v541 = vmax.f32 %v472, 0.0
        %v542 = vmax.f32 %v474, 0.0
        %v543 = vmax.f32 %v525, 0.0
        %v544 = vmax.f32 %v527, 0.0
        %v545 = vld [vmem:[%s4] sm:$0xff]
        %v546 = vld [vmem:[%s4 + $0x8] sm:$0xff]
        %v547 = vld [vmem:[%s4 + $0x10] sm:$0xff]
        %v548 = vld [vmem:[%s4 + $0x18] sm:$0xff]
        %550 = vset.pattern.permute.xlu0 0
        %551 = vperm.xlu0 %550, %v545
        %v552 = vpop.permute.xlu0 %551
        %555 = vset.pattern.permute.xlu0 0
        %556 = vperm.xlu0 %555, %v546
        %v557 = vpop.permute.xlu0 %556
        %560 = vset.pattern.permute.xlu0 0
        %561 = vperm.xlu0 %560, %v547
        %v562 = vpop.permute.xlu0 %561
        %565 = vset.pattern.permute.xlu0 0
        %566 = vperm.xlu0 %565, %v548
        %v567 = vpop.permute.xlu0 %566
        %v569 = vmul.f32 %v529, %v552
        %v570 = vmul.f32 %v530, %v552
        %v571 = vmul.f32 %v531, %v552
        %v572 = vmul.f32 %v532, %v552
        %v573 = vmul.f32 %v533, %v557
        %v574 = vmul.f32 %v534, %v557
        %v575 = vmul.f32 %v535, %v557
        %v576 = vmul.f32 %v536, %v557
        %v577 = vmul.f32 %v537, %v562
        %v578 = vmul.f32 %v538, %v562
        %v579 = vmul.f32 %v539, %v562
        %v580 = vmul.f32 %v540, %v562
        %v581 = vmul.f32 %v541, %v567
        %v582 = vmul.f32 %v542, %v567
        %v583 = vmul.f32 %v543, %v567
        %v584 = vmul.f32 %v544, %v567
        %v585 = vadd.f32 %v569, %v573
        %v586 = vadd.f32 %v585, %v577
        %v587 = vadd.f32 %v586, %v581
        %v588 = vrot.slane %v587, 4
        %v589 = vadd.f32 %v587, %v588
        %v590 = vrot.slane %v589, 2
        %v591 = vadd.f32 %v589, %v590
        %v592 = vrot.slane %v591, 1
        %v593 = vadd.f32 %v591, %v592
        %v594 = vadd.f32 %v570, %v574
        %v595 = vadd.f32 %v594, %v578
        %v596 = vadd.f32 %v595, %v582
        %v597 = vrot.slane %v596, 4
        %v598 = vadd.f32 %v596, %v597
        %v599 = vrot.slane %v598, 2
        %v600 = vadd.f32 %v598, %v599
        %v601 = vrot.slane %v600, 1
        %v602 = vadd.f32 %v600, %v601
        %v603 = vadd.f32 %v571, %v575
        %v604 = vadd.f32 %v603, %v579
        %v605 = vadd.f32 %v604, %v583
        %v606 = vrot.slane %v605, 4
        %v607 = vadd.f32 %v605, %v606
        %v608 = vrot.slane %v607, 2
        %v609 = vadd.f32 %v607, %v608
        %v610 = vrot.slane %v609, 1
        %v611 = vadd.f32 %v609, %v610
        %v612 = vadd.f32 %v572, %v576
        %v613 = vadd.f32 %v612, %v580
        %v614 = vadd.f32 %v613, %v584
        %v615 = vrot.slane %v614, 4
        %v616 = vadd.f32 %v614, %v615
        %v617 = vrot.slane %v616, 2
        %v618 = vadd.f32 %v616, %v617
        %v619 = vrot.slane %v618, 1
        %v620 = vadd.f32 %v618, %v619
        %s621 = sld [smem:[#allocation2]]
        %v622 = vstv %s621
        %v623 = vadd.f32 %v593, %v622
        %v624 = vadd.f32 %v602, %v622
        %v625 = vadd.f32 %v611, %v622
        %v626 = vadd.f32 %v620, %v622
        %v631 = vcombine.low %v623, %v624
        %v632 = vcombine.low %v625, %v626
        %v634 = vunpack.c.l.s4 1966171168
        %v635 = vunpack.c.0.s8 %v634
        %v636 = vlaneseq
        %v637 = vshrl.u32 %v636, 7
        %v638 = vsub.s32 %v635, %v637
        %v639 = vrot.slane %v631, %v638
        %v641 = vunpack.c.l.s4 1966171168
        %v642 = vunpack.c.0.s8 %v641
        %v643 = vlaneseq
        %v644 = vshrl.u32 %v643, 7
        %v645 = vsub.s32 %v642, %v644
        %v646 = vrot.slane %v632, %v645
        %v647 = vcombine.low %v639, %v646
        %v649 = vunpack.c.l.s4 1966171168
        %v650 = vunpack.c.0.s8 %v649
        %v651 = vlaneseq
        %v652 = vshrl.u32 %v651, 7
        %v653 = vsub.s32 %v650, %v652
        %v654 = vrot.slane %v647, %v653
        %v656 = vlaneseq
        %vm657 = vcmp.ge.s32.totalorder %v656, 0
        %vm658 = vcmp.lt.s32.totalorder %v656, 512
        %vm659 = vmand %vm657, %vm658
        %660 = vst.msk [vmem:[%s256] sm:$0xf] %vm659, %v654
        %s661 = sand.u32 %s165, 1
        %s662 = scalar_lea.sflag [#allocation4], %s661
        %s663 = sand.u32 %s165, 1
        %s664 = smul.addr %s663, 4
        %s665 = scalar_lea.vmem [#allocation3], %s664
        // Predicated region
        $region45: #{mlp_predictor_forward.1} parent=43 // pred_check
          %p666 = pneg %p175
        $region46: #{mlp_predictor_forward.1} parent=43 // pred_check_branch
          %668 = sbr.rel (%p666) target = $region48
        $region47: #{mlp_predictor_forward.1} parent=43 // pred_region
          %s670 = ssub.s32 64, 64
          %671 = vsyncadd %s662, %s670
          %s672 = smul.addr %s21, 4
          %s673 = smul.addr %s672, 16
          %s674 = scalar_lea.hbm %s6, %s673
          %s676 = sshll.u32 %s665, 4
          %s677 = int_to_ptr.vmem [resolvable:$true] %s676
          %679 = dma.vmem_to_hbm [thread:$0]  %s677, 64, %s674, %s662
        $region48: #{mlp_predictor_forward.1} parent=43 // pred_fallthru
          _
      $region44: #{mlp_predictor_forward.1} parent=5 // pred_fallthru
        _
      %p680 = scmp.le.s32.totalorder 2, %s16
      // Predicated region
      $region49: #{mlp_predictor_forward.1} parent=5 // pred_check
        %p681 = pneg %p680
      $region50: #{mlp_predictor_forward.1} parent=5 // pred_check_branch
        %683 = sbr.rel (%p681) target = $region52
      $region51: #{mlp_predictor_forward.1} parent=5 // pred_region
        %s684 = ssub.s32 %s16, 2
        // Predicated region
        $region53: #{mlp_predictor_forward.1} parent=51 // pred_check
          %p685 = pneg %p181
        $region54: #{mlp_predictor_forward.1} parent=51 // pred_check_branch
          %687 = sbr.rel (%p685) target = $region56
        $region55: #{mlp_predictor_forward.1} parent=51 // pred_region
          %s688 = sand.u32 %s166, 1
          %s689 = scalar_lea.sflag [#allocation4], %s688
          %s690 = sand.u32 %s166, 1
          %s691 = smul.addr %s690, 4
          %s692 = scalar_lea.vmem [#allocation3], %s691
          %693 = dma.done %s689, 64
        $region56: #{mlp_predictor_forward.1} parent=51 // pred_fallthru
          _
      $region52: #{mlp_predictor_forward.1} parent=5 // pred_fallthru
        _
    $region6: #{mlp_predictor_forward.1} parent=1 // loop_footer
      %s20 = sadd.s32 1, %s16
    $region7: #{mlp_predictor_forward.1} parent=1 // loop_footer_branch
      %15 = sbr.rel target = $region3
    $region8: #{mlp_predictor_forward.1} parent=1 // loop_exit
      _
    %694 = vsyncpa [#allocation4], 1
    %s695 = scalar_lea.sflag [#allocation4], 1
    %696 = vsyncpa %s695, 1

</llo_original>
